<compile_context>
chip_gen: v7x
topology: tpu7x:2x2x1
jax: 0.10.0
libtpu: 0.0.40
codegen_flags: <defaults>
</compile_context>

<pallas_src>
import functools

import jax
import jax.numpy as jnp
from jax.experimental import pallas as pl
from jax.experimental.pallas import tpu as pltpu

C_SCALE = 10.0
M_NEG = -100000.0
LANE = 128


def _round_up(x, m):
    return pl.cdiv(x, m) * m


def attention_kernel(q_ref, t_ref, mask_ref,
                     wq_ref, wr_ref, bqr_ref, v_ref, bv_ref,
                     out_ref, *, seq_len):
    """One batch tile of the Bahdanau-attention forward.

    q_ref:    [TB, Hp]      bf16   query
    t_ref:    [TB*S, Hp]    bf16   target rows (flattened batch*seq, S % 8 == 0)
    mask_ref: [TB, Sp]      int32  1 = already visited (padded lanes are 1)
    wq_ref:   [Hp, Hp]      bf16   W_q weight, pre-transposed (y = x @ W)
    wr_ref:   [Hp, Hp]      bf16   W_ref weight, pre-transposed
    bqr_ref:  [1, Hp]       f32    b_q + b_ref (folded once, added to q_proj only)
    v_ref:    [1, Hp]       f32    v weight row (zero-padded)
    bv_ref:   [1]           f32    v bias (SMEM scalar)
    out_ref:  [TB, Sp]      f32    C * tanh(masked logits), lane-dense
    """
    TB, Hp = q_ref.shape
    S = seq_len
    Sp = out_ref.shape[-1]

    # ---- MXU: projections (bf16 in, f32 accumulate). Both biases folded into the
    # small q projection -> no [TB*S, Hp] broadcast-add on the big tensor. ----
    q_proj = jnp.dot(q_ref[...], wq_ref[...],
                     preferred_element_type=jnp.float32) + bqr_ref[...]    # [TB, Hp]
    r_proj = jnp.dot(t_ref[...], wr_ref[...],
                     preferred_element_type=jnp.float32)                   # [TB*S, Hp]

    # S is a multiple of 8 (wrapper pads), so this reshape never splits a sublane
    # tile -> no relayout copy of the largest intermediate.
    r_proj = r_proj.reshape(TB, S, Hp)

    # ---- EUP/VPU: tanh(W_ref(target) + W_q(query) + b) in f32 ----
    u = jnp.tanh(r_proj + q_proj[:, None, :])                              # [TB, S, Hp]

    # ---- v-projection: VPU multiply + XLU lane-reduce over only the S real rows ----
    v_row = v_ref[...].reshape(1, 1, Hp)
    logits = jnp.sum(u * v_row, axis=-1) + bv_ref[0]                       # [TB, S] f32

    # Lane-pad only the (small) logits to Sp; padded lanes are masked below
    # (mask padded lanes are 1) and sliced off in the wrapper.
    if Sp > S:
        logits = jnp.concatenate(
            [logits, jnp.zeros((TB, Sp - S), jnp.float32)], axis=-1)       # [TB, Sp]

    # ---- mask -> M, then C * tanh; one dense, unmasked store row per sublane ----
    visited = mask_ref[...] != 0                                           # [TB, Sp]
    logits = jnp.where(visited, M_NEG, logits)
    out_ref[...] = C_SCALE * jnp.tanh(logits)


def _vmem_limit_bytes():
    """Scoped-VMEM limit scaled per generation (v7x: 64 MiB physical -> 32 MiB;
    v5e/v6e: 128 MiB -> 64 MiB). Conservative 32 MiB fallback."""
    try:
        cap = pltpu.get_tpu_info().vmem_capacity_bytes
        return int(min(cap // 2, 64 * 1024 * 1024))
    except Exception:
        return 32 * 1024 * 1024


def _pick_batch_tile(B, S8, Hp, budget_bytes, vmem_limit, min_grid_steps=2):
    """Largest legal batch tile whose per-step VMEM footprint fits the budget.

    Footprint per batch row ~= 2x bf16 target pipeline buffers + f32 r_proj + f32 u
    (+ one transient product) + the small per-row query/mask/logits/out blocks.
    Legality (dense 2D tiles): TB divides B, and TB % 8 == 0 or TB == B.
    Keeps >= min_grid_steps grid steps when that stays legal (v7x megacore).
    """
    Sp = _round_up(S8, LANE)
    per_row = S8 * Hp * (2 * 2 + 4 + 4 + 4) + Hp * 4 + Sp * (4 + 4 + 4)
    cap = max(1, budget_bytes // per_row)
    steps_cap = B // min_grid_steps
    if steps_cap >= 8:
        cap = min(cap, steps_cap)
    cap = min(cap, B)
    for tb in range(cap, 0, -1):
        if B % tb == 0 and tb % 8 == 0:
            return tb
    # No 8-aligned divisor fits the budget: fall back to the full batch (block ==
    # array dims is always layout-legal) but refuse if that clearly cannot fit.
    if B * per_row > vmem_limit:
        raise ValueError(
            f"Attention kernel: no batch tile of B={B} fits in VMEM "
            f"(pad batch to a multiple of 8 or reduce seq/hidden).")
    return B


def init_params(key, hidden_size):
    """PyTorch-style Linear init (uniform +-1/sqrt(fan_in)); unpadded f32.

    W_q:   Linear(H, H) -> weight [H, H], bias [H]
    W_ref: Linear(H, H) -> weight [H, H], bias [H]
    v:     Linear(H, 1) -> weight [1, H], bias [1]
    Weights are returned pre-transposed so the kernel computes y = x @ W.
    """
    H = hidden_size
    k = jax.random.split(key, 6)
    bound = 1.0 / (H ** 0.5)
    wq = jax.random.uniform(k[0], (H, H), jnp.float32, -bound, bound)
    bq = jax.random.uniform(k[1], (H,), jnp.float32, -bound, bound)
    wr = jax.random.uniform(k[2], (H, H), jnp.float32, -bound, bound)
    br = jax.random.uniform(k[3], (H,), jnp.float32, -bound, bound)
    vw = jax.random.uniform(k[4], (1, H), jnp.float32, -bound, bound)
    bv = jax.random.uniform(k[5], (1,), jnp.float32, -bound, bound)
    return (wq.T, bq, wr.T, br, vw[0], bv)


def prepare_params(params, hidden_size):
    """Zero-pad H -> multiple of 128, cast HxH weights to bf16, fold b_q + b_ref.

    Zero-padding is exact: padded projection columns are 0 + 0 bias -> tanh(0)=0,
    and the padded v entries are 0, so they contribute nothing to the logits.
    """
    wq_t, bq, wr_t, br, v_w, bv = params
    H = hidden_size
    Hp = _round_up(H, LANE)
    p2 = ((0, Hp - H), (0, Hp - H))
    p1 = ((0, Hp - H),)
    wq_p = jnp.pad(wq_t, p2).astype(jnp.bfloat16)
    wr_p = jnp.pad(wr_t, p2).astype(jnp.bfloat16)
    bqr_p = jnp.pad(bq + br, p1).reshape(1, Hp).astype(jnp.float32)   # folded bias
    v_p = jnp.pad(v_w, p1).reshape(1, Hp).astype(jnp.float32)
    bv_p = jnp.asarray(bv, jnp.float32).reshape(1)
    return (wq_p, wr_p, bqr_p, v_p, bv_p)


def attention_forward(query, target, mask, prepared_params, batch_tile=None):
    """Mirrors Attention.forward: returns (target, logits)."""
    B, S, H = target.shape
    wq_p, wr_p, bqr_p, v_p, bv_p = prepared_params
    Hp = wq_p.shape[0]
    S8 = _round_up(S, 8)       # sublane-align seq: in-kernel reshape stays layout-free
    Sp = _round_up(S, LANE)    # lane-dense output width

    vmem_limit = _vmem_limit_bytes()
    weight_bytes = 2 * (Hp * Hp * 2) * 2              # two bf16 HxH weights, 2 buffers
    budget = max(1 << 20, vmem_limit // 2 - weight_bytes)

    TB = batch_tile if batch_tile is not None else _pick_batch_tile(
        B, S8, Hp, budget, vmem_limit)
    assert B % TB == 0, "batch_tile must divide batch"
    assert TB % 8 == 0 or TB == B, "batch_tile must be a multiple of 8 (or the full batch)"

    # Pad hidden -> Hp, seq -> S8; cast MXU operands to bf16 (halves target HBM bytes).
    q_p = jnp.pad(query, ((0, 0), (0, Hp - H))).astype(jnp.bfloat16)              # [B, Hp]
    t_p = jnp.pad(target, ((0, 0), (0, S8 - S), (0, Hp - H))).astype(jnp.bfloat16)
    t_p = t_p.reshape(B * S8, Hp)                                                 # [B*S8, Hp]
    # Pad mask lanes with 1 ("visited") so padded seq rows / lanes take the M path.
    m_p = jnp.pad(mask.astype(jnp.int32), ((0, 0), (0, Sp - S)),
                  constant_values=1)                                              # [B, Sp]

    grid = (B // TB,)
    const2 = lambda i: (0, 0)
    row2 = lambda i: (i, 0)

    cost = pl.CostEstimate(
        flops=2 * B * (S8 + 1) * Hp * Hp + 6 * B * S8 * Hp,
        transcendentals=B * S8 * Hp + B * Sp,
        bytes_accessed=int(t_p.size * 2 + q_p.size * 2 + m_p.size * 4
                           + 2 * Hp * Hp * 2 + 2 * Hp * 4 + 4 + B * Sp * 4),
    )

    # TODO(synk): for large H, mark the constant-index weight specs single-buffered
    # (pipeline_mode) to halve their VMEM; negligible at Hp=128 so left at default.
    out = pl.pallas_call(
        functools.partial(attention_kernel, seq_len=S8),
        out_shape=jax.ShapeDtypeStruct((B, Sp), jnp.float32),
        grid=grid,
        in_specs=[
            pl.BlockSpec((TB, Hp), row2),                         # query tile
            pl.BlockSpec((TB * S8, Hp), row2),                    # target tile (pipelined)
            pl.BlockSpec((TB, Sp), row2),                         # mask tile
            pl.BlockSpec((Hp, Hp), const2),                       # W_q (VMEM-resident)
            pl.BlockSpec((Hp, Hp), const2),                       # W_ref
            pl.BlockSpec((1, Hp), const2),                        # b_q + b_ref
            pl.BlockSpec((1, Hp), const2),                        # v
            pl.BlockSpec(memory_space=pltpu.MemorySpace.SMEM),    # b_v scalar
        ],
        out_specs=pl.BlockSpec((TB, Sp), row2),
        compiler_params=pltpu.CompilerParams(
            dimension_semantics=("parallel",),        # shard batch grid across TCs (v7x)
            vmem_limit_bytes=vmem_limit,
        ),
        cost_estimate=cost,
    )(q_p, t_p, m_p, wq_p, wr_p, bqr_p, v_p, bv_p)

    logits = out[:, :S]
    return target, logits


def reference_forward(query, target, mask, params):
    """Pure-JAX f32 reference of the PyTorch forward."""
    wq_t, bq, wr_t, br, v_w, bv = params
    q_proj = query @ wq_t + bq                       # [B, H]
    r_proj = target @ wr_t + br                      # [B, S, H]
    u = jnp.tanh(r_proj + q_proj[:, None, :])
    logits = jnp.einsum('bsh,h->bs', u, v_w) + bv[0]
    logits = jnp.where(mask, M_NEG, logits)
    return C_SCALE * jnp.tanh(logits)


if __name__ == "__main__":
    B, S, H = 16, 8, 32
    key = jax.random.PRNGKey(0)
    kq, kt, km, kp = jax.random.split(key, 4)

    query = jax.random.normal(kq, (B, H), jnp.float32)
    target = jax.random.normal(kt, (B, S, H), jnp.float32)
    mask = jax.random.bernoulli(km, 0.3, (B, S))      # bool [B, S]

    params = init_params(kp, H)
    prepared = prepare_params(params, H)              # pad + bf16 cast + bias fold, once

    tgt_out, logits = attention_forward(query, target, mask, prepared)
    jax.block_until_ready(logits)

    assert tgt_out.shape == (B, S, H)
    assert logits.shape == (B, S)

    # (1) Tight check vs. a reference using the same bf16 rounding of the MXU inputs.
    q16 = lambda x: x.astype(jnp.bfloat16).astype(jnp.float32)
    wq_t, bq, wr_t, br, v_w, bv = params
    params_q = (q16(wq_t), bq, q16(wr_t), br, v_w, bv)
    ref_q = reference_forward(q16(query), q16(target), mask, params_q)
    assert jnp.allclose(logits, ref_q, atol=1e-3, rtol=1e-3), "mismatch vs bf16-rounded reference"

    # (2) Loose sanity check vs. the full-f32 (PyTorch-equivalent) reference.
    ref_f32 = reference_forward(query, target, mask, params)
    assert jnp.allclose(logits, ref_f32, atol=0.5), "mismatch vs f32 reference"

    print("KERNEL_OK")
</pallas_src>

<mosaic_0001>
module attributes {stable_mosaic.version = 11 : i64} {
  func.func @attention_kernel(%arg0: i32, %arg1: memref<8x128xbf16, #tpu.memory_space<vmem>>, %arg2: memref<64x128xbf16, #tpu.memory_space<vmem>>, %arg3: memref<8x128xi32, #tpu.memory_space<vmem>>, %arg4: memref<128x128xbf16, #tpu.memory_space<vmem>>, %arg5: memref<128x128xbf16, #tpu.memory_space<vmem>>, %arg6: memref<1x128xf32, #tpu.memory_space<vmem>>, %arg7: memref<1x128xf32, #tpu.memory_space<vmem>>, %arg8: memref<1xf32, #tpu.memory_space<smem>>, %arg9: memref<8x128xf32, #tpu.memory_space<vmem>>) attributes {dimension_semantics = [#tpu.dimension_semantics<parallel>], iteration_bounds = array<i64: 2>, scalar_prefetch = 0 : i64, scratch_operands = 0 : i64, tpu.core_type = #tpu.core_type<tc>, window_params = [{transform_indices = @transform_0, window_bounds = array<i64: 8, 128>}, {transform_indices = @transform_1, window_bounds = array<i64: 64, 128>}, {transform_indices = @transform_2, window_bounds = array<i64: 8, 128>}, {pipeline_mode = #tpu.pipeline_mode<synchronous>, transform_indices = @transform_3, window_bounds = array<i64: 128, 128>}, {pipeline_mode = #tpu.pipeline_mode<synchronous>, transform_indices = @transform_4, window_bounds = array<i64: 128, 128>}, {pipeline_mode = #tpu.pipeline_mode<synchronous>, transform_indices = @transform_5, window_bounds = array<i64: 1, 128>}, {pipeline_mode = #tpu.pipeline_mode<synchronous>, transform_indices = @transform_6, window_bounds = array<i64: 1, 128>}, {transform_indices = @transform_7, window_bounds = array<i64: 1>}, {transform_indices = @transform_8, window_bounds = array<i64: 8, 128>}]} {
    %c0 = arith.constant 0 : index
    %c0_0 = arith.constant 0 : index
    %0 = vector.load %arg1[%c0, %c0_0] : memref<8x128xbf16, #tpu.memory_space<vmem>>, vector<8x128xbf16>
    %c0_1 = arith.constant 0 : index
    %c0_2 = arith.constant 0 : index
    %1 = vector.load %arg4[%c0_1, %c0_2] : memref<128x128xbf16, #tpu.memory_space<vmem>>, vector<128x128xbf16>
    %cst = arith.constant dense<0.000000e+00> : vector<8x128xf32>
    %2 = tpu.matmul %0, %1, %cst {dimension_numbers = #tpu.dot_dimension_numbers<[1], [0], [0], [1], [0, 0, 1, 1], [], []>} : vector<8x128xbf16>, vector<128x128xbf16>, vector<8x128xf32> -> vector<8x128xf32>
    %c0_3 = arith.constant 0 : index
    %c0_4 = arith.constant 0 : index
    %3 = vector.load %arg6[%c0_3, %c0_4] : memref<1x128xf32, #tpu.memory_space<vmem>>, vector<1x128xf32>
    %4 = vector.broadcast %3 : vector<1x128xf32> to vector<8x128xf32>
    %5 = arith.addf %2, %4 : vector<8x128xf32>
    %c0_5 = arith.constant 0 : index
    %c0_6 = arith.constant 0 : index
    %6 = vector.load %arg2[%c0_5, %c0_6] : memref<64x128xbf16, #tpu.memory_space<vmem>>, vector<64x128xbf16>
    %c0_7 = arith.constant 0 : index
    %c0_8 = arith.constant 0 : index
    %7 = vector.load %arg5[%c0_7, %c0_8] : memref<128x128xbf16, #tpu.memory_space<vmem>>, vector<128x128xbf16>
    %cst_9 = arith.constant dense<0.000000e+00> : vector<64x128xf32>
    %8 = tpu.matmul %6, %7, %cst_9 {dimension_numbers = #tpu.dot_dimension_numbers<[1], [0], [0], [1], [0, 0, 1, 1], [], []>} : vector<64x128xbf16>, vector<128x128xbf16>, vector<64x128xf32> -> vector<64x128xf32>
    %9 = vector.shape_cast %8 : vector<64x128xf32> to vector<8x8x128xf32>
    %10 = vector.shape_cast %5 : vector<8x128xf32> to vector<8x1x128xf32>
    %11 = vector.broadcast %10 : vector<8x1x128xf32> to vector<8x8x128xf32>
    %12 = arith.addf %9, %11 : vector<8x8x128xf32>
    %13 = math.tanh %12 : vector<8x8x128xf32>
    %c0_10 = arith.constant 0 : index
    %c0_11 = arith.constant 0 : index
    %14 = vector.load %arg7[%c0_10, %c0_11] : memref<1x128xf32, #tpu.memory_space<vmem>>, vector<1x128xf32>
    %15 = vector.shape_cast %14 : vector<1x128xf32> to vector<1x1x128xf32>
    %16 = vector.broadcast %15 : vector<1x1x128xf32> to vector<8x8x128xf32>
    %17 = arith.mulf %13, %16 : vector<8x8x128xf32>
    %cst_12 = arith.constant dense<0.000000e+00> : vector<8x8xf32>
    %18 = vector.multi_reduction <add>, %17, %cst_12 [2] : vector<8x8x128xf32> to vector<8x8xf32>
    %c0_13 = arith.constant 0 : index
    %19 = memref.load %arg8[%c0_13] : memref<1xf32, #tpu.memory_space<smem>>
    %20 = vector.broadcast %19 : f32 to vector<8x8xf32>
    %21 = arith.addf %18, %20 : vector<8x8xf32>
    %cst_14 = arith.constant 0.000000e+00 : f32
    %22 = vector.broadcast %cst_14 : f32 to vector<8x120xf32>
    %23 = tpu.concatenate %21, %22 in 1 : vector<8x8xf32>, vector<8x120xf32> -> vector<8x128xf32>
    %c0_15 = arith.constant 0 : index
    %c0_16 = arith.constant 0 : index
    %24 = vector.load %arg3[%c0_15, %c0_16] : memref<8x128xi32, #tpu.memory_space<vmem>>, vector<8x128xi32>
    %c0_i32 = arith.constant 0 : i32
    %25 = vector.broadcast %c0_i32 : i32 to vector<8x128xi32>
    %26 = arith.cmpi ne, %24, %25 : vector<8x128xi32>
    %cst_17 = arith.constant -1.000000e+05 : f32
    %27 = vector.broadcast %cst_17 : f32 to vector<8x128xf32>
    %28 = arith.select %26, %27, %23 : vector<8x128xi1>, vector<8x128xf32>
    %29 = math.tanh %28 : vector<8x128xf32>
    %cst_18 = arith.constant 1.000000e+01 : f32
    %30 = vector.broadcast %cst_18 : f32 to vector<8x128xf32>
    %31 = arith.mulf %30, %29 : vector<8x128xf32>
    %c0_19 = arith.constant 0 : index
    %c0_20 = arith.constant 0 : index
    %32 = vector.load %arg9[%c0_19, %c0_20] : memref<8x128xf32, #tpu.memory_space<vmem>>, vector<8x128xf32>
    tpu.vector_store %arg9[%c0_19, %c0_20], %31 {strides = array<i32>} : memref<8x128xf32, #tpu.memory_space<vmem>>, vector<8x128xf32>,
    return
  }
  func.func @transform_0(%arg0: i32) -> (i32, i32) {
    %c0_i32 = arith.constant 0 : i32
    %c0_i32_0 = arith.constant 0 : i32
    return %arg0, %c0_i32 : i32, i32
  }
  func.func @transform_1(%arg0: i32) -> (i32, i32) {
    %c0_i32 = arith.constant 0 : i32
    %c0_i32_0 = arith.constant 0 : i32
    return %arg0, %c0_i32 : i32, i32
  }
  func.func @transform_2(%arg0: i32) -> (i32, i32) {
    %c0_i32 = arith.constant 0 : i32
    %c0_i32_0 = arith.constant 0 : i32
    return %arg0, %c0_i32 : i32, i32
  }
  func.func @transform_3(%arg0: i32) -> (i32, i32) {
    %c0_i32 = arith.constant 0 : i32
    %c0_i32_0 = arith.constant 0 : i32
    %c0_i32_1 = arith.constant 0 : i32
    return %c0_i32, %c0_i32_0 : i32, i32
  }
  func.func @transform_4(%arg0: i32) -> (i32, i32) {
    %c0_i32 = arith.constant 0 : i32
    %c0_i32_0 = arith.constant 0 : i32
    %c0_i32_1 = arith.constant 0 : i32
    return %c0_i32, %c0_i32_0 : i32, i32
  }
  func.func @transform_5(%arg0: i32) -> (i32, i32) {
    %c0_i32 = arith.constant 0 : i32
    %c0_i32_0 = arith.constant 0 : i32
    %c0_i32_1 = arith.constant 0 : i32
    return %c0_i32, %c0_i32_0 : i32, i32
  }
  func.func @transform_6(%arg0: i32) -> (i32, i32) {
    %c0_i32 = arith.constant 0 : i32
    %c0_i32_0 = arith.constant 0 : i32
    %c0_i32_1 = arith.constant 0 : i32
    return %c0_i32, %c0_i32_0 : i32, i32
  }
  func.func @transform_7(%arg0: i32) -> i32 {
    %c0_i32 = arith.constant 0 : i32
    %c0_i32_0 = arith.constant 0 : i32
    return %c0_i32 : i32
  }
  func.func @transform_8(%arg0: i32) -> (i32, i32) {
    %c0_i32 = arith.constant 0 : i32
    %c0_i32_0 = arith.constant 0 : i32
    return %arg0, %c0_i32 : i32, i32
  }
}

</mosaic_0001>

<llo_original>
// kernel: tpu_custom_call.1
$region0: #{tpu_custom_call.1}
  #allocation0 [shape = 'u32[]', space=smem, size = 0x4, offset = 0x4, fixed_abs, tag = 'smem constant byte address 0x4 - core index']
  #allocation1 [shape = 'u32[144,128]{1,0:T(1,128)}', space=vmem, size = 0x12000, scoped, tag = 'internal scratch']
  #allocation2 [shape = 'f32[1]{0:T(128)S(6)}', space=smem, size = 0x200, scoped, tag = 'scoped memory for tpu_custom_call.1']
  %s0 = inlined_call_operand.hbm [shape: bf16[16,128], index: 0, kind: input, shape index: {}]
  %s1 = inlined_call_operand.hbm [shape: bf16[128,128], index: 1, kind: input, shape index: {}]
  %s2 = inlined_call_operand.hbm [shape: s32[16,128], index: 2, kind: input, shape index: {}]
  %s3 = inlined_call_operand.hbm [shape: bf16[128,128], index: 3, kind: input, shape index: {}]
  %s4 = inlined_call_operand.hbm [shape: bf16[128,128], index: 4, kind: input, shape index: {}]
  %s5 = inlined_call_operand.vmem [shape: f32[1,128], index: 5, kind: input, shape index: {}]
  %s6 = inlined_call_operand.vmem [shape: f32[1,128], index: 6, kind: input, shape index: {}]
  %s7 = inlined_call_operand.<no memory space> [shape: f32[1], index: 7, kind: input, shape index: {}]
  %s8 = inlined_call_operand.hbm [shape: f32[16,128], index: 8, kind: output, shape index: {}]
  %s9 = sld [smem:[#allocation0]]
  $region85: #{tpu_custom_call.1} parent=0
    _
  %s11 = ssub.s32 1, %s9
  %s12 = scalar_select 0, %s11, %s9
  %13 = sst [smem:[#allocation2]] %s7
  $region1: #{tpu_custom_call.1} parent=0
    #allocation3 [shape = 'u8[4096]{0}', space=vmem, size = 0x1000, scoped, tag = 'input window, operand 0']
    #allocation4 [shape = 's32[2]{0}', space=sflag, size = 0x8, scoped, tag = 'scoped memory for tpu_custom_call.1']
    #allocation5 [shape = 's32[2]{0}', space=sflag, size = 0x8, scoped, tag = 'scoped memory for tpu_custom_call.1']
    #allocation6 [shape = 'u8[32768]{0}', space=vmem, size = 0x8000, scoped, tag = 'input window, operand 1']
    #allocation7 [shape = 's32[2]{0}', space=sflag, size = 0x8, scoped, tag = 'scoped memory for tpu_custom_call.1']
    #allocation8 [shape = 'u8[8192]{0}', space=vmem, size = 0x2000, scoped, tag = 'input window, operand 2']
    #allocation9 [shape = 'u8[32768]{0}', space=vmem, size = 0x8000, scoped, tag = 'input window, operand 3, single buffered']
    #allocation10 [shape = 's32[1]{0}', space=sflag, size = 0x4, scoped, tag = 'scoped memory for tpu_custom_call.1']
    #allocation11 [shape = 'u8[32768]{0}', space=vmem, size = 0x8000, scoped, tag = 'input window, operand 4, single buffered']
    #allocation12 [shape = 'u8[8192]{0}', space=vmem, size = 0x2000, scoped, tag = 'output window, operand 0']
    %14 = vsyncpa [#allocation4], 0
    %s15 = scalar_lea.sflag [#allocation4], 1
    %16 = vsyncpa %s15, 0
    %17 = vsyncpa [#allocation7], 0
    %s18 = scalar_lea.sflag [#allocation7], 1
    %19 = vsyncpa %s18, 0
    %20 = vsyncpa [#allocation10], 0
    %21 = vsyncpa [#allocation5], 0
    %s22 = scalar_lea.sflag [#allocation5], 1
    %23 = vsyncpa %s22, 0
    loop: start=0, step=1, limit=4
    $region2: #{tpu_custom_call.1} parent=1 // loop_pre_header
      _
    $region3: #{tpu_custom_call.1} parent=1 // loop_header
      %s25 = sphi 0, %s29
      %p26 = scmp.ge.s32.totalorder %s25, 4
      %s35 = sphi 0, %s37
      %s38 = sphi 0, %s35
      %s39 = sphi 0, %s38
      %s55 = sphi 0, %s39
      %s61 = sphi 0, %s63
      %s64 = sphi 0, %s61
      %s65 = sphi 0, %s64
      %s81 = sphi 0, %s65
      %s87 = sphi 0, %s89
      %s90 = sphi 0, %s87
      %s91 = sphi 0, %s90
      %s107 = sphi 0, %s91
      %s111 = sphi 0, %s111
      %s113 = sphi 0, %s111
      %s114 = sphi 0, %s113
      %s128 = sphi 0, %s114
      %s132 = sphi 0, %s132
      %s134 = sphi 0, %s132
      %s135 = sphi 0, %s134
      %s149 = sphi 0, %s135
      %s153 = sphi 0, %s153
      %s155 = sphi 0, %s153
      %s156 = sphi 0, %s155
      %s170 = sphi 0, %s156
      %s174 = sphi 0, %s174
      %s176 = sphi 0, %s174
      %s177 = sphi 0, %s176
      %s191 = sphi 0, %s177
      %s195 = sphi 0, %s195
      %s197 = sphi 0, %s195
      %s198 = sphi 0, %s197
      %s212 = sphi 0, %s198
      %s218 = sphi 0, %s220
      %s221 = sphi 0, %s218
      %s222 = sphi 0, %s221
      %s238 = sphi 0, %s222
    $region4: #{tpu_custom_call.1} parent=1 // loop_header_branch
      %28 = sbr.rel (%p26) target = $region8
    $region5: #{tpu_custom_call.1} parent=1 // loop_body
      %s30 = ssub.s32 %s25, 1
      %s31 = ssub.s32 %s25, 2
      %s32 = sadd.s32 %s25, 1
      %s33 = ssub.s32 %s25, %s32
      %p34 = scmp.eq.s32.totalorder %s33, 0
      %s36 = sadd.s32 %s35, 1
      %s37 = scalar_select %p34, %s35, %s36
      %p40 = pneg %p34
      %p41 = scmp.eq.s32.totalorder %s25, 1
      %p42 = por %p40, %p41
      %p43 = scmp.ne.s32.totalorder %s35, %s38
      %p44 = scmp.eq.s32.totalorder %s25, 0
      %p45 = por %p43, %p44
      %p46 = scmp.ne.s32.totalorder %s35, %s38
      %p47 = scmp.eq.s32.totalorder %s30, 1
      %p48 = por %p46, %p47
      %p49 = scmp.ne.s32.totalorder %s38, %s39
      %p50 = scmp.eq.s32.totalorder %s30, 0
      %p51 = por %p49, %p50
      %p52 = scmp.ne.s32.totalorder %s38, %s39
      %p53 = scmp.eq.s32.totalorder %s31, 1
      %p54 = por %p52, %p53
      %p56 = scmp.ne.s32.totalorder %s39, %s55
      %p57 = scmp.eq.s32.totalorder %s31, 0
      %p58 = por %p56, %p57
      %s59 = ssub.s32 %s25, %s32
      %p60 = scmp.eq.s32.totalorder %s59, 0
      %s62 = sadd.s32 %s61, 1
      %s63 = scalar_select %p60, %s61, %s62
      %p66 = pneg %p60
      %p67 = scmp.eq.s32.totalorder %s25, 1
      %p68 = por %p66, %p67
      %p69 = scmp.ne.s32.totalorder %s61, %s64
      %p70 = scmp.eq.s32.totalorder %s25, 0
      %p71 = por %p69, %p70
      %p72 = scmp.ne.s32.totalorder %s61, %s64
      %p73 = scmp.eq.s32.totalorder %s30, 1
      %p74 = por %p72, %p73
      %p75 = scmp.ne.s32.totalorder %s64, %s65
      %p76 = scmp.eq.s32.totalorder %s30, 0
      %p77 = por %p75, %p76
      %p78 = scmp.ne.s32.totalorder %s64, %s65
      %p79 = scmp.eq.s32.totalorder %s31, 1
      %p80 = por %p78, %p79
      %p82 = scmp.ne.s32.totalorder %s65, %s81
      %p83 = scmp.eq.s32.totalorder %s31, 0
      %p84 = por %p82, %p83
      %s85 = ssub.s32 %s25, %s32
      %p86 = scmp.eq.s32.totalorder %s85, 0
      %s88 = sadd.s32 %s87, 1
      %s89 = scalar_select %p86, %s87, %s88
      %p92 = pneg %p86
      %p93 = scmp.eq.s32.totalorder %s25, 1
      %p94 = por %p92, %p93
      %p95 = scmp.ne.s32.totalorder %s87, %s90
      %p96 = scmp.eq.s32.totalorder %s25, 0
      %p97 = por %p95, %p96
      %p98 = scmp.ne.s32.totalorder %s87, %s90
      %p99 = scmp.eq.s32.totalorder %s30, 1
      %p100 = por %p98, %p99
      %p101 = scmp.ne.s32.totalorder %s90, %s91
      %p102 = scmp.eq.s32.totalorder %s30, 0
      %p103 = por %p101, %p102
      %p104 = scmp.ne.s32.totalorder %s90, %s91
      %p105 = scmp.eq.s32.totalorder %s31, 1
      %p106 = por %p104, %p105
      %p108 = scmp.ne.s32.totalorder %s91, %s107
      %p109 = scmp.eq.s32.totalorder %s31, 0
      %p110 = por %p108, %p109
      %s112 = sadd.s32 %s111, 1
      %p115 = scmp.eq.s32.totalorder %s25, 1
      %p116 = scmp.ne.s32.totalorder %s111, %s113
      %p117 = scmp.eq.s32.totalorder %s25, 0
      %p118 = por %p116, %p117
      %p119 = scmp.ne.s32.totalorder %s111, %s113
      %p120 = scmp.eq.s32.totalorder %s30, 1
      %p121 = por %p119, %p120
      %p122 = scmp.ne.s32.totalorder %s113, %s114
      %p123 = scmp.eq.s32.totalorder %s30, 0
      %p124 = por %p122, %p123
      %p125 = scmp.ne.s32.totalorder %s113, %s114
      %p126 = scmp.eq.s32.totalorder %s31, 1
      %p127 = por %p125, %p126
      %p129 = scmp.ne.s32.totalorder %s114, %s128
      %p130 = scmp.eq.s32.totalorder %s31, 0
      %p131 = por %p129, %p130
      %s133 = sadd.s32 %s132, 1
      %p136 = scmp.eq.s32.totalorder %s25, 1
      %p137 = scmp.ne.s32.totalorder %s132, %s134
      %p138 = scmp.eq.s32.totalorder %s25, 0
      %p139 = por %p137, %p138
      %p140 = scmp.ne.s32.totalorder %s132, %s134
      %p141 = scmp.eq.s32.totalorder %s30, 1
      %p142 = por %p140, %p141
      %p143 = scmp.ne.s32.totalorder %s134, %s135
      %p144 = scmp.eq.s32.totalorder %s30, 0
      %p145 = por %p143, %p144
      %p146 = scmp.ne.s32.totalorder %s134, %s135
      %p147 = scmp.eq.s32.totalorder %s31, 1
      %p148 = por %p146, %p147
      %p150 = scmp.ne.s32.totalorder %s135, %s149
      %p151 = scmp.eq.s32.totalorder %s31, 0
      %p152 = por %p150, %p151
      %s154 = sadd.s32 %s153, 1
      %p157 = scmp.eq.s32.totalorder %s25, 1
      %p158 = scmp.ne.s32.totalorder %s153, %s155
      %p159 = scmp.eq.s32.totalorder %s25, 0
      %p160 = por %p158, %p159
      %p161 = scmp.ne.s32.totalorder %s153, %s155
      %p162 = scmp.eq.s32.totalorder %s30, 1
      %p163 = por %p161, %p162
      %p164 = scmp.ne.s32.totalorder %s155, %s156
      %p165 = scmp.eq.s32.totalorder %s30, 0
      %p166 = por %p164, %p165
      %p167 = scmp.ne.s32.totalorder %s155, %s156
      %p168 = scmp.eq.s32.totalorder %s31, 1
      %p169 = por %p167, %p168
      %p171 = scmp.ne.s32.totalorder %s156, %s170
      %p172 = scmp.eq.s32.totalorder %s31, 0
      %p173 = por %p171, %p172
      %s175 = sadd.s32 %s174, 1
      %p178 = scmp.eq.s32.totalorder %s25, 1
      %p179 = scmp.ne.s32.totalorder %s174, %s176
      %p180 = scmp.eq.s32.totalorder %s25, 0
      %p181 = por %p179, %p180
      %p182 = scmp.ne.s32.totalorder %s174, %s176
      %p183 = scmp.eq.s32.totalorder %s30, 1
      %p184 = por %p182, %p183
      %p185 = scmp.ne.s32.totalorder %s176, %s177
      %p186 = scmp.eq.s32.totalorder %s30, 0
      %p187 = por %p185, %p186
      %p188 = scmp.ne.s32.totalorder %s176, %s177
      %p189 = scmp.eq.s32.totalorder %s31, 1
      %p190 = por %p188, %p189
      %p192 = scmp.ne.s32.totalorder %s177, %s191
      %p193 = scmp.eq.s32.totalorder %s31, 0
      %p194 = por %p192, %p193
      %s196 = sadd.s32 %s195, 1
      %p199 = scmp.eq.s32.totalorder %s25, 1
      %p200 = scmp.ne.s32.totalorder %s195, %s197
      %p201 = scmp.eq.s32.totalorder %s25, 0
      %p202 = por %p200, %p201
      %p203 = scmp.ne.s32.totalorder %s195, %s197
      %p204 = scmp.eq.s32.totalorder %s30, 1
      %p205 = por %p203, %p204
      %p206 = scmp.ne.s32.totalorder %s197, %s198
      %p207 = scmp.eq.s32.totalorder %s30, 0
      %p208 = por %p206, %p207
      %p209 = scmp.ne.s32.totalorder %s197, %s198
      %p210 = scmp.eq.s32.totalorder %s31, 1
      %p211 = por %p209, %p210
      %p213 = scmp.ne.s32.totalorder %s198, %s212
      %p214 = scmp.eq.s32.totalorder %s31, 0
      %p215 = por %p213, %p214
      %s216 = ssub.s32 %s25, %s32
      %p217 = scmp.eq.s32.totalorder %s216, 0
      %s219 = sadd.s32 %s218, 1
      %s220 = scalar_select %p217, %s218, %s219
      %p223 = pneg %p217
      %p224 = scmp.eq.s32.totalorder %s25, 1
      %p225 = por %p223, %p224
      %p226 = scmp.ne.s32.totalorder %s218, %s221
      %p227 = scmp.eq.s32.totalorder %s25, 0
      %p228 = por %p226, %p227
      %p229 = scmp.ne.s32.totalorder %s218, %s221
      %p230 = scmp.eq.s32.totalorder %s30, 1
      %p231 = por %p229, %p230
      %p232 = scmp.ne.s32.totalorder %s221, %s222
      %p233 = scmp.eq.s32.totalorder %s30, 0
      %p234 = por %p232, %p233
      %p235 = scmp.ne.s32.totalorder %s221, %s222
      %p236 = scmp.eq.s32.totalorder %s31, 1
      %p237 = por %p235, %p236
      %p239 = scmp.ne.s32.totalorder %s222, %s238
      %p240 = scmp.eq.s32.totalorder %s31, 0
      %p241 = por %p239, %p240
      %p242 = scmp.le.s32.totalorder 1, %s25
      %p243 = scmp.lt.s32.totalorder %s25, 3
      %p244 = pnand %p242, %p243
      %p245 = pneg %p244
      // Predicated region
      $region9: #{tpu_custom_call.1} parent=5 // pred_check
        _
      $region10: #{tpu_custom_call.1} parent=5 // pred_check_branch
        %247 = sbr.rel (%p244) target = $region12
      $region11: #{tpu_custom_call.1} parent=5 // pred_region
        %s248 = ssub.s32 %s25, 1
        // Predicated region
        $region13: #{tpu_custom_call.1} parent=11 // pred_check
          %p249 = pneg %p124
        $region14: #{tpu_custom_call.1} parent=11 // pred_check_branch
          %251 = sbr.rel (%p249) target = $region16
        $region15: #{tpu_custom_call.1} parent=11 // pred_region
          %s253 = ssub.s32 1024, 1024
          %254 = vsyncadd [#allocation10], %s253
          %s255 = sshll.u32 [#allocation9], 4
          %s256 = int_to_ptr.vmem [resolvable:$true] %s255
          %261 = dma.hbm_to_vmem [thread:$0]  %s3, 1024, %s256, [#allocation10], 64, 64, 4
        $region16: #{tpu_custom_call.1} parent=11 // pred_fallthru
          _
        // Predicated region
        $region17: #{tpu_custom_call.1} parent=11 // pred_check
          %p262 = pneg %p145
        $region18: #{tpu_custom_call.1} parent=11 // pred_check_branch
          %264 = sbr.rel (%p262) target = $region20
        $region19: #{tpu_custom_call.1} parent=11 // pred_region
          %s266 = ssub.s32 1024, 1024
          %267 = vsyncadd [#allocation10], %s266
          %s268 = sshll.u32 [#allocation11], 4
          %s269 = int_to_ptr.vmem [resolvable:$true] %s268
          %274 = dma.hbm_to_vmem [thread:$0]  %s4, 1024, %s269, [#allocation10], 64, 64, 4
        $region20: #{tpu_custom_call.1} parent=11 // pred_fallthru
          _
        // Predicated region
        $region21: #{tpu_custom_call.1} parent=11 // pred_check
          %p275 = pneg %p166
        $region22: #{tpu_custom_call.1} parent=11 // pred_check_branch
          %277 = sbr.rel (%p275) target = $region24
        $region23: #{tpu_custom_call.1} parent=11 // pred_region
          _
        $region24: #{tpu_custom_call.1} parent=11 // pred_fallthru
          _
        // Predicated region
        $region25: #{tpu_custom_call.1} parent=11 // pred_check
          %p278 = pneg %p187
        $region26: #{tpu_custom_call.1} parent=11 // pred_check_branch
          %280 = sbr.rel (%p278) target = $region28
        $region27: #{tpu_custom_call.1} parent=11 // pred_region
          _
        $region28: #{tpu_custom_call.1} parent=11 // pred_fallthru
          _
        // Predicated region
        $region29: #{tpu_custom_call.1} parent=11 // pred_check
          %p281 = pneg %p208
        $region30: #{tpu_custom_call.1} parent=11 // pred_check_branch
          %283 = sbr.rel (%p281) target = $region32
        $region31: #{tpu_custom_call.1} parent=11 // pred_region
          _
        $region32: #{tpu_custom_call.1} parent=11 // pred_fallthru
          _
      $region12: #{tpu_custom_call.1} parent=5 // pred_fallthru
        _
      %p284 = scmp.lt.s32.totalorder %s25, 2
      // Predicated region
      $region33: #{tpu_custom_call.1} parent=5 // pred_check
        %p285 = pneg %p284
      $region34: #{tpu_custom_call.1} parent=5 // pred_check_branch
        %287 = sbr.rel (%p285) target = $region36
      $region35: #{tpu_custom_call.1} parent=5 // pred_region
        // Predicated region
        $region37: #{tpu_custom_call.1} parent=35 // pred_check
          %p288 = pneg %p45
        $region38: #{tpu_custom_call.1} parent=35 // pred_check_branch
          %290 = sbr.rel (%p288) target = $region40
        $region39: #{tpu_custom_call.1} parent=35 // pred_region
          %s291 = sand.u32 %s35, 1
          %s292 = scalar_lea.sflag [#allocation4], %s291
          %s293 = sand.u32 %s35, 1
          %s294 = smul.addr %s293, 4
          %s295 = scalar_lea.vmem [#allocation3], %s294
          %s297 = ssub.s32 64, 64
          %298 = vsyncadd %s292, %s297
          %s299 = smul.addr %s25, 64
          %s300 = scalar_lea.hbm %s0, %s299
          %s302 = sshll.u32 %s295, 4
          %s303 = int_to_ptr.vmem [resolvable:$true] %s302
          %305 = dma.hbm_to_vmem [thread:$0]  %s300, 64, %s303, %s292
        $region40: #{tpu_custom_call.1} parent=35 // pred_fallthru
          _
        // Predicated region
        $region41: #{tpu_custom_call.1} parent=35 // pred_check
          %p306 = pneg %p71
        $region42: #{tpu_custom_call.1} parent=35 // pred_check_branch
          %308 = sbr.rel (%p306) target = $region44
        $region43: #{tpu_custom_call.1} parent=35 // pred_region
          %s309 = sand.u32 %s25, 1
          %s310 = scalar_lea.sflag [#allocation7], %s309
          %s311 = sand.u32 %s61, 1
          %s312 = smul.addr %s311, 32
          %s313 = scalar_lea.vmem [#allocation6], %s312
          %s314 = smul.u32 8, %s25
          %s316 = ssub.s32 512, 512
          %317 = vsyncadd %s310, %s316
          %s318 = smul.addr %s314, 64
          %s319 = scalar_lea.hbm %s1, %s318
          %s320 = sshll.u32 %s313, 4
          %s321 = int_to_ptr.vmem [resolvable:$true] %s320
          %326 = dma.hbm_to_vmem [thread:$0]  %s319, 512, %s321, %s310, 64, 64, 4
        $region44: #{tpu_custom_call.1} parent=35 // pred_fallthru
          _
        // Predicated region
        $region45: #{tpu_custom_call.1} parent=35 // pred_check
          %p327 = pneg %p97
        $region46: #{tpu_custom_call.1} parent=35 // pred_check_branch
          %329 = sbr.rel (%p327) target = $region48
        $region47: #{tpu_custom_call.1} parent=35 // pred_region
          %s330 = sand.u32 %s25, 1
          %s331 = scalar_lea.sflag [#allocation7], %s330
          %s332 = sand.u32 %s87, 1
          %s333 = smul.addr %s332, 8
          %s334 = scalar_lea.vmem [#allocation8], %s333
          %s336 = ssub.s32 128, 128
          %337 = vsyncadd %s331, %s336
          %s338 = smul.addr %s25, 128
          %s339 = scalar_lea.hbm %s2, %s338
          %s341 = sshll.u32 %s334, 4
          %s342 = int_to_ptr.vmem [resolvable:$true] %s341
          %344 = dma.hbm_to_vmem [thread:$0]  %s339, 128, %s342, %s331
        $region48: #{tpu_custom_call.1} parent=35 // pred_fallthru
          _
      $region36: #{tpu_custom_call.1} parent=5 // pred_fallthru
        _
      %p345 = scmp.le.s32.totalorder 1, %s25
      %p346 = scmp.lt.s32.totalorder %s25, 3
      %p347 = pnand %p345, %p346
      %p348 = pneg %p347
      // Predicated region
      $region49: #{tpu_custom_call.1} parent=5 // pred_check
        _
      $region50: #{tpu_custom_call.1} parent=5 // pred_check_branch
        %350 = sbr.rel (%p347) target = $region52
      $region51: #{tpu_custom_call.1} parent=5 // pred_region
        %s351 = ssub.s32 %s25, 1
        %s352 = sand.u32 %s38, 1
        %s353 = scalar_lea.sflag [#allocation4], %s352
        %s354 = sand.u32 %s38, 1
        %s355 = smul.addr %s354, 4
        %s356 = scalar_lea.vmem [#allocation3], %s355
        // Predicated region
        $region53: #{tpu_custom_call.1} parent=51 // pred_check
          %p357 = pneg %p51
        $region54: #{tpu_custom_call.1} parent=51 // pred_check_branch
          %359 = sbr.rel (%p357) target = $region56
        $region55: #{tpu_custom_call.1} parent=51 // pred_region
          %360 = dma.done %s353, 64
        $region56: #{tpu_custom_call.1} parent=51 // pred_fallthru
          _
        %s361 = sand.u32 %s30, 1
        %s362 = scalar_lea.sflag [#allocation7], %s361
        %s363 = sand.u32 %s64, 1
        %s364 = smul.addr %s363, 32
        %s365 = scalar_lea.vmem [#allocation6], %s364
        // Predicated region
        $region57: #{tpu_custom_call.1} parent=51 // pred_check
          %p366 = pneg %p77
        $region58: #{tpu_custom_call.1} parent=51 // pred_check_branch
          %368 = sbr.rel (%p366) target = $region60
        $region59: #{tpu_custom_call.1} parent=51 // pred_region
          %369 = dma.done %s362, 512
        $region60: #{tpu_custom_call.1} parent=51 // pred_fallthru
          _
        %s370 = sand.u32 %s30, 1
        %s371 = scalar_lea.sflag [#allocation7], %s370
        %s372 = sand.u32 %s90, 1
        %s373 = smul.addr %s372, 8
        %s374 = scalar_lea.vmem [#allocation8], %s373
        // Predicated region
        $region61: #{tpu_custom_call.1} parent=51 // pred_check
          %p375 = pneg %p103
        $region62: #{tpu_custom_call.1} parent=51 // pred_check_branch
          %377 = sbr.rel (%p375) target = $region64
        $region63: #{tpu_custom_call.1} parent=51 // pred_region
          %378 = dma.done %s371, 128
        $region64: #{tpu_custom_call.1} parent=51 // pred_fallthru
          _
        // Predicated region
        $region65: #{tpu_custom_call.1} parent=51 // pred_check
          %p379 = pneg %p124
        $region66: #{tpu_custom_call.1} parent=51 // pred_check_branch
          %381 = sbr.rel (%p379) target = $region68
        $region67: #{tpu_custom_call.1} parent=51 // pred_region
          %382 = dma.done [#allocation10], 1024
        $region68: #{tpu_custom_call.1} parent=51 // pred_fallthru
          _
        // Predicated region
        $region69: #{tpu_custom_call.1} parent=51 // pred_check
          %p383 = pneg %p145
        $region70: #{tpu_custom_call.1} parent=51 // pred_check_branch
          %385 = sbr.rel (%p383) target = $region72
        $region71: #{tpu_custom_call.1} parent=51 // pred_region
          %386 = dma.done [#allocation10], 1024
        $region72: #{tpu_custom_call.1} parent=51 // pred_fallthru
          _
        %s387 = sand.u32 %s38, 1
        %s388 = scalar_lea.sflag [#allocation4], %s387
        %s389 = sand.u32 %s38, 1
        %s390 = smul.addr %s389, 4
        %s391 = scalar_lea.vmem [#allocation3], %s390
        %p392 = pneg %p51
        %p393 = pneg %p48
        %s394 = sand.u32 %s30, 1
        %s395 = scalar_lea.sflag [#allocation7], %s394
        %s396 = sand.u32 %s64, 1
        %s397 = smul.addr %s396, 32
        %s398 = scalar_lea.vmem [#allocation6], %s397
        %p399 = pneg %p77
        %p400 = pneg %p74
        %s401 = sand.u32 %s30, 1
        %s402 = scalar_lea.sflag [#allocation7], %s401
        %s403 = sand.u32 %s90, 1
        %s404 = smul.addr %s403, 8
        %s405 = scalar_lea.vmem [#allocation8], %s404
        %p406 = pneg %p103
        %p407 = pneg %p100
        %p408 = pneg %p124
        %p409 = pneg %p121
        %p410 = pneg %p145
        %p411 = pneg %p142
        %p412 = pneg %p166
        %p413 = pneg %p163
        %p414 = pneg %p187
        %p415 = pneg %p184
        %p416 = pneg %p208
        %p417 = pneg %p205
        %p418 = pneg %p234
        %p419 = pneg %p231
        %s420 = sand.u32 %s221, 1
        %s421 = scalar_lea.sflag [#allocation5], %s420
        %s422 = sand.u32 %s221, 1
        %s423 = smul.addr %s422, 8
        %s424 = scalar_lea.vmem [#allocation12], %s423
        %s425 = smul.u32 8, %s30
        %v427 = vld [vmem:[%s356] sm:$0xf]
        %v428 = vld [vmem:[#allocation9] sm:$0xf]
        %v429 = vld [vmem:[#allocation9 + $0x4] sm:$0xf]
        %v430 = vld [vmem:[#allocation9 + $0x8] sm:$0xf]
        %v431 = vld [vmem:[#allocation9 + $0xc] sm:$0xf]
        %v432 = vld [vmem:[#allocation9 + $0x10] sm:$0xf]
        %v433 = vld [vmem:[#allocation9 + $0x14] sm:$0xf]
        %v434 = vld [vmem:[#allocation9 + $0x18] sm:$0xf]
        %v435 = vld [vmem:[#allocation9 + $0x1c] sm:$0xf]
        %v436 = vld [vmem:[#allocation9 + $0x20] sm:$0xf]
        %v437 = vld [vmem:[#allocation9 + $0x24] sm:$0xf]
        %v438 = vld [vmem:[#allocation9 + $0x28] sm:$0xf]
        %v439 = vld [vmem:[#allocation9 + $0x2c] sm:$0xf]
        %v440 = vld [vmem:[#allocation9 + $0x30] sm:$0xf]
        %v441 = vld [vmem:[#allocation9 + $0x34] sm:$0xf]
        %v442 = vld [vmem:[#allocation9 + $0x38] sm:$0xf]
        %v443 = vld [vmem:[#allocation9 + $0x3c] sm:$0xf]
        %v444 = vld [vmem:[%s5] sm:$0x1]
        %v446 = vlaneseq
        %v447 = vshrl.u32 %v446, 7
        %v448 = vsub.s32 0, %v447
        %v449 = vrot.slane %v444, %v448
        %v467 = vunpack.c.l.b16 %v428
        %v468 = vunpack.c.l.b16 %v429
        %v469 = vunpack.c.l.b16 %v430
        %v470 = vunpack.c.l.b16 %v431
        %v471 = vunpack.c.l.b16 %v432
        %v472 = vunpack.c.l.b16 %v433
        %v473 = vunpack.c.l.b16 %v434
        %v474 = vunpack.c.l.b16 %v435
        %v475 = vunpack.c.l.b16 %v436
        %v476 = vunpack.c.l.b16 %v437
        %v477 = vunpack.c.l.b16 %v438
        %v478 = vunpack.c.l.b16 %v439
        %v479 = vunpack.c.l.b16 %v440
        %v480 = vunpack.c.l.b16 %v441
        %v481 = vunpack.c.l.b16 %v442
        %v482 = vunpack.c.l.b16 %v443
        %v483 = vpack.c.b16 %v468, %v467
        %v484 = vpack.c.b16 %v470, %v469
        %v485 = vpack.c.b16 %v472, %v471
        %v486 = vpack.c.b16 %v474, %v473
        %v487 = vpack.c.b16 %v476, %v475
        %v488 = vpack.c.b16 %v478, %v477
        %v489 = vpack.c.b16 %v480, %v479
        %v490 = vpack.c.b16 %v482, %v481
        %499 = vmatprep.subr.bf16.mxu0 0
        %500 = vmatpush1.bf16.msra.mxu0 %v483
        %501 = vmatprep.subr.bf16.mxu0 0
        %502 = vmatpush1.bf16.msra.mxu0 %v484
        %503 = vmatprep.subr.bf16.mxu0 0
        %504 = vmatpush1.bf16.msra.mxu0 %v485
        %505 = vmatprep.subr.bf16.mxu0 0
        %506 = vmatpush1.bf16.msra.mxu0 %v486
        %507 = vmatprep.subr.bf16.mxu0 0
        %508 = vmatpush1.bf16.msra.mxu0 %v487
        %509 = vmatprep.subr.bf16.mxu0 0
        %510 = vmatpush1.bf16.msra.mxu0 %v488
        %511 = vmatprep.subr.bf16.mxu0 0
        %512 = vmatpush1.bf16.msra.mxu0 %v489
        %513 = vmatprep.subr.bf16.mxu0 0
        %514 = vmatpush1.bf16.msra.mxu0 %v490
        %515 = vmatprep.subr.bf16.mxu0 0
        %516 = vmatpush1.bf16.msra.mxu0 0
        %517 = vmatprep.subr.bf16.mxu0 0
        %518 = vmatpush1.bf16.msra.mxu0 0
        %519 = vmatprep.subr.bf16.mxu0 0
        %520 = vmatpush1.bf16.msra.mxu0 0
        %521 = vmatprep.subr.bf16.mxu0 0
        %522 = vmatpush1.bf16.msra.mxu0 0
        %523 = vmatprep.subr.bf16.mxu0 0
        %524 = vmatpush1.bf16.msra.mxu0 0
        %525 = vmatprep.subr.bf16.mxu0 0
        %526 = vmatpush1.bf16.msra.mxu0 0
        %527 = vmatprep.subr.bf16.mxu0 0
        %528 = vmatpush1.bf16.msra.mxu0 0
        %529 = vmatprep.subr.bf16.mxu0 0
        %530 = vmatpush1.bf16.msra.mxu0 0
        %531 = vmatprep.mubr.bf16.mxu0 0
        %532 = vmatmul.mubr.bf16.gmra.mrb[0].mxu0 %v427
        %v533 = vpop.f32.mrb[0].mxu0
        %v534 = vadd.f32 %v449, %v533
        %v535 = vpop.f32.mrb[0].mxu0
        %v536 = vpop.f32.mrb[0].mxu0
        %v537 = vpop.f32.mrb[0].mxu0
        %538 = vdwg.mxu0
        %v539 = vld [vmem:[%s365] sm:$0xf]
        %v540 = vld [vmem:[%s365 + $0x4] sm:$0xf]
        %v541 = vld [vmem:[%s365 + $0x8] sm:$0xf]
        %v542 = vld [vmem:[%s365 + $0xc] sm:$0xf]
        %v543 = vld [vmem:[%s365 + $0x10] sm:$0xf]
        %v544 = vld [vmem:[%s365 + $0x14] sm:$0xf]
        %v545 = vld [vmem:[%s365 + $0x18] sm:$0xf]
        %v546 = vld [vmem:[%s365 + $0x1c] sm:$0xf]
        %v547 = vld [vmem:[#allocation11] sm:$0xf]
        %v548 = vld [vmem:[#allocation11 + $0x4] sm:$0xf]
        %v549 = vld [vmem:[#allocation11 + $0x8] sm:$0xf]
        %v550 = vld [vmem:[#allocation11 + $0xc] sm:$0xf]
        %v551 = vld [vmem:[#allocation11 + $0x10] sm:$0xf]
        %v552 = vld [vmem:[#allocation11 + $0x14] sm:$0xf]
        %v553 = vld [vmem:[#allocation11 + $0x18] sm:$0xf]
        %v554 = vld [vmem:[#allocation11 + $0x1c] sm:$0xf]
        %v555 = vld [vmem:[#allocation11 + $0x20] sm:$0xf]
        %v556 = vld [vmem:[#allocation11 + $0x24] sm:$0xf]
        %v557 = vld [vmem:[#allocation11 + $0x28] sm:$0xf]
        %v558 = vld [vmem:[#allocation11 + $0x2c] sm:$0xf]
        %v559 = vld [vmem:[#allocation11 + $0x30] sm:$0xf]
        %v560 = vld [vmem:[#allocation11 + $0x34] sm:$0xf]
        %v561 = vld [vmem:[#allocation11 + $0x38] sm:$0xf]
        %v562 = vld [vmem:[#allocation11 + $0x3c] sm:$0xf]
        %v571 = vunpack.c.l.b16 %v539
        %v572 = vunpack.c.l.b16 %v540
        %v573 = vunpack.c.l.b16 %v541
        %v574 = vunpack.c.l.b16 %v542
        %v575 = vunpack.c.l.b16 %v543
        %v576 = vunpack.c.l.b16 %v544
        %v577 = vunpack.c.l.b16 %v545
        %v578 = vunpack.c.l.b16 %v546
        %v579 = vpack.c.b16 %v572, %v571
        %v580 = vpack.c.b16 %v574, %v573
        %v581 = vpack.c.b16 %v576, %v575
        %v582 = vpack.c.b16 %v578, %v577
        %v603 = vunpack.c.l.b16 %v547
        %v604 = vunpack.c.l.b16 %v548
        %v605 = vunpack.c.l.b16 %v549
        %v606 = vunpack.c.l.b16 %v550
        %v607 = vunpack.c.l.b16 %v551
        %v608 = vunpack.c.l.b16 %v552
        %v609 = vunpack.c.l.b16 %v553
        %v610 = vunpack.c.l.b16 %v554
        %v611 = vunpack.c.l.b16 %v555
        %v612 = vunpack.c.l.b16 %v556
        %v613 = vunpack.c.l.b16 %v557
        %v614 = vunpack.c.l.b16 %v558
        %v615 = vunpack.c.l.b16 %v559
        %v616 = vunpack.c.l.b16 %v560
        %v617 = vunpack.c.l.b16 %v561
        %v618 = vunpack.c.l.b16 %v562
        %v619 = vpack.c.b16 %v604, %v603
        %v620 = vpack.c.b16 %v606, %v605
        %v621 = vpack.c.b16 %v608, %v607
        %v622 = vpack.c.b16 %v610, %v609
        %v623 = vpack.c.b16 %v612, %v611
        %v624 = vpack.c.b16 %v614, %v613
        %v625 = vpack.c.b16 %v616, %v615
        %v626 = vpack.c.b16 %v618, %v617
        %635 = vmatprep.subr.bf16.mxu0 0
        %636 = vmatpush1.bf16.msra.mxu0 %v619
        %637 = vmatprep.subr.bf16.mxu0 0
        %638 = vmatpush1.bf16.msra.mxu0 %v620
        %639 = vmatprep.subr.bf16.mxu0 0
        %640 = vmatpush1.bf16.msra.mxu0 %v621
        %641 = vmatprep.subr.bf16.mxu0 0
        %642 = vmatpush1.bf16.msra.mxu0 %v622
        %643 = vmatprep.subr.bf16.mxu0 0
        %644 = vmatpush1.bf16.msra.mxu0 %v623
        %645 = vmatprep.subr.bf16.mxu0 0
        %646 = vmatpush1.bf16.msra.mxu0 %v624
        %647 = vmatprep.subr.bf16.mxu0 0
        %648 = vmatpush1.bf16.msra.mxu0 %v625
        %649 = vmatprep.subr.bf16.mxu0 0
        %650 = vmatpush1.bf16.msra.mxu0 %v626
        %651 = vmatprep.subr.bf16.mxu0 0
        %652 = vmatpush1.bf16.msra.mxu0 0
        %653 = vmatprep.subr.bf16.mxu0 0
        %654 = vmatpush1.bf16.msra.mxu0 0
        %655 = vmatprep.subr.bf16.mxu0 0
        %656 = vmatpush1.bf16.msra.mxu0 0
        %657 = vmatprep.subr.bf16.mxu0 0
        %658 = vmatpush1.bf16.msra.mxu0 0
        %659 = vmatprep.subr.bf16.mxu0 0
        %660 = vmatpush1.bf16.msra.mxu0 0
        %661 = vmatprep.subr.bf16.mxu0 0
        %662 = vmatpush1.bf16.msra.mxu0 0
        %663 = vmatprep.subr.bf16.mxu0 0
        %664 = vmatpush1.bf16.msra.mxu0 0
        %665 = vmatprep.subr.bf16.mxu0 0
        %666 = vmatpush1.bf16.msra.mxu0 0
        %667 = vmatprep.mubr.bf16.mxu0 0
        %668 = vmatmul.mubr.bf16.gmra.mrb[0].mxu0 %v579
        %v669 = vpop.f32.mrb[0].mxu0
        %v670 = vadd.f32 0.0, %v669
        %v671 = vpop.f32.mrb[0].mxu0
        %v672 = vpop.f32.mrb[0].mxu0
        %v673 = vadd.f32 0.0, %v672
        %v674 = vpop.f32.mrb[0].mxu0
        %675 = vmatprep.mubr.bf16.mxu0 0
        %676 = vmatmul.mubr.bf16.gmra.mrb[0].mxu0 %v580
        %v677 = vpop.f32.mrb[0].mxu0
        %v678 = vadd.f32 0.0, %v677
        %v679 = vpop.f32.mrb[0].mxu0
        %v680 = vpop.f32.mrb[0].mxu0
        %v681 = vadd.f32 0.0, %v680
        %v682 = vpop.f32.mrb[0].mxu0
        %683 = vmatprep.mubr.bf16.mxu0 0
        %684 = vmatmul.mubr.bf16.gmra.mrb[0].mxu0 %v581
        %v685 = vpop.f32.mrb[0].mxu0
        %v686 = vadd.f32 0.0, %v685
        %v687 = vpop.f32.mrb[0].mxu0
        %v688 = vpop.f32.mrb[0].mxu0
        %v689 = vadd.f32 0.0, %v688
        %v690 = vpop.f32.mrb[0].mxu0
        %691 = vmatprep.mubr.bf16.mxu0 0
        %692 = vmatmul.mubr.bf16.gmra.mrb[0].mxu0 %v582
        %v693 = vpop.f32.mrb[0].mxu0
        %v694 = vadd.f32 0.0, %v693
        %v695 = vpop.f32.mrb[0].mxu0
        %v696 = vpop.f32.mrb[0].mxu0
        %v697 = vadd.f32 0.0, %v696
        %v698 = vpop.f32.mrb[0].mxu0
        %699 = vdwg.mxu0
        %v701 = vcombine.high %v534, %v534
        %v703 = vunpack.c.l.s4 1966171168
        %v704 = vunpack.c.0.s8 %v703
        %v705 = vlaneseq
        %v706 = vshrl.u32 %v705, 7
        %v707 = vsub.s32 %v704, %v706
        %v708 = vrot.slane %v534, %v707
        %v710 = vunpack.c.l.s4 1966171168
        %v711 = vunpack.c.0.s8 %v710
        %v712 = vlaneseq
        %v713 = vshrl.u32 %v712, 7
        %v714 = vsub.s32 %v711, %v713
        %v715 = vrot.slane %v701, %v714
        %v716 = vcombine.high %v708, %v708
        %v717 = vcombine.high %v715, %v715
        %v719 = vunpack.c.l.s4 1966171168
        %v720 = vunpack.c.0.s8 %v719
        %v721 = vlaneseq
        %v722 = vshrl.u32 %v721, 7
        %v723 = vsub.s32 %v720, %v722
        %v724 = vrot.slane %v708, %v723
        %v726 = vunpack.c.l.s4 1966171168
        %v727 = vunpack.c.0.s8 %v726
        %v728 = vlaneseq
        %v729 = vshrl.u32 %v728, 7
        %v730 = vsub.s32 %v727, %v729
        %v731 = vrot.slane %v715, %v730
        %v733 = vunpack.c.l.s4 1966171168
        %v734 = vunpack.c.0.s8 %v733
        %v735 = vlaneseq
        %v736 = vshrl.u32 %v735, 7
        %v737 = vsub.s32 %v734, %v736
        %v738 = vrot.slane %v716, %v737
        %v740 = vunpack.c.l.s4 1966171168
        %v741 = vunpack.c.0.s8 %v740
        %v742 = vlaneseq
        %v743 = vshrl.u32 %v742, 7
        %v744 = vsub.s32 %v741, %v743
        %v745 = vrot.slane %v717, %v744
        %v746 = vcombine.high %v724, %v724
        %v747 = vcombine.high %v731, %v731
        %v748 = vcombine.high %v738, %v738
        %v749 = vcombine.high %v745, %v745
        %v750 = vlaneseq
        %v751 = vshrl.u32 %v750, 7
        %v752 = vsub.s32 0, %v751
        %v753 = vrot.slane %v724, %v752
        %v754 = vlaneseq
        %v755 = vshrl.u32 %v754, 7
        %v756 = vsub.s32 0, %v755
        %v757 = vrot.slane %v738, %v756
        %v758 = vlaneseq
        %v759 = vshrl.u32 %v758, 7
        %v760 = vsub.s32 0, %v759
        %v761 = vrot.slane %v746, %v760
        %v762 = vlaneseq
        %v763 = vshrl.u32 %v762, 7
        %v764 = vsub.s32 0, %v763
        %v765 = vrot.slane %v748, %v764
        %v766 = vlaneseq
        %v767 = vshrl.u32 %v766, 7
        %v768 = vsub.s32 0, %v767
        %v769 = vrot.slane %v731, %v768
        %v770 = vlaneseq
        %v771 = vshrl.u32 %v770, 7
        %v772 = vsub.s32 0, %v771
        %v773 = vrot.slane %v745, %v772
        %v774 = vlaneseq
        %v775 = vshrl.u32 %v774, 7
        %v776 = vsub.s32 0, %v775
        %v777 = vrot.slane %v747, %v776
        %v778 = vlaneseq
        %v779 = vshrl.u32 %v778, 7
        %v780 = vsub.s32 0, %v779
        %v781 = vrot.slane %v749, %v780
        %v790 = vadd.f32 %v670, %v753
        %v791 = vadd.f32 %v673, %v757
        %v792 = vadd.f32 %v678, %v761
        %v793 = vadd.f32 %v681, %v765
        %v794 = vadd.f32 %v686, %v769
        %v795 = vadd.f32 %v689, %v773
        %v796 = vadd.f32 %v694, %v777
        %v797 = vadd.f32 %v697, %v781
        %v798 = vtanh.pop %v790
        %v799 = vtanh.pop %v791
        %v800 = vtanh.pop %v792
        %v801 = vtanh.pop %v793
        %v802 = vtanh.pop %v794
        %v803 = vtanh.pop %v795
        %v804 = vtanh.pop %v796
        %v805 = vtanh.pop %v797
        %v806 = vld [vmem:[%s6] sm:$0x1]
        %v808 = vlaneseq
        %v809 = vshrl.u32 %v808, 7
        %v810 = vsub.s32 0, %v809
        %v811 = vrot.slane %v806, %v810
        %v813 = vmul.f32 %v798, %v811
        %v814 = vmul.f32 %v799, %v811
        %v815 = vmul.f32 %v800, %v811
        %v816 = vmul.f32 %v801, %v811
        %v817 = vmul.f32 %v802, %v811
        %v818 = vmul.f32 %v803, %v811
        %v819 = vmul.f32 %v804, %v811
        %v820 = vmul.f32 %v805, %v811
        %821 = vadd.xlane.f32.xlu0 %v813
        %v822 = vpop.xlane.xlu0 %821
        %823 = vadd.xlane.f32.xlu0 %v814
        %v824 = vpop.xlane.xlu0 %823
        %825 = vadd.xlane.f32.xlu0 %v815
        %v826 = vpop.xlane.xlu0 %825
        %827 = vadd.xlane.f32.xlu0 %v816
        %v828 = vpop.xlane.xlu0 %827
        %829 = vadd.xlane.f32.xlu0 %v817
        %v830 = vpop.xlane.xlu0 %829
        %831 = vadd.xlane.f32.xlu0 %v818
        %v832 = vpop.xlane.xlu0 %831
        %833 = vadd.xlane.f32.xlu0 %v819
        %v834 = vpop.xlane.xlu0 %833
        %835 = vadd.xlane.f32.xlu0 %v820
        %v836 = vpop.xlane.xlu0 %835
        %s837 = sld [smem:[#allocation2]]
        %v838 = vstv %s837
        %v839 = vadd.f32 %v822, %v838
        %v840 = vadd.f32 %v824, %v838
        %v841 = vadd.f32 %v826, %v838
        %v842 = vadd.f32 %v828, %v838
        %v843 = vadd.f32 %v830, %v838
        %v844 = vadd.f32 %v832, %v838
        %v845 = vadd.f32 %v834, %v838
        %v846 = vadd.f32 %v836, %v838
        %v855 = vlaneseq
        %v856 = vand.u32 %v855, 127
        %v857 = vlaneseq
        %v858 = vshrl.u32 %v857, 7
        %v859 = vsub.s32 %v856, %v858
        %v860 = vrot.slane %v839, %v859
        %v861 = vlaneseq
        %v862 = vshrl.u32 %v861, 7
        %v863 = vsub.s32 %v856, %v862
        %v864 = vrot.slane %v840, %v863
        %v865 = vlaneseq
        %v866 = vshrl.u32 %v865, 7
        %v867 = vsub.s32 %v856, %v866
        %v868 = vrot.slane %v841, %v867
        %v869 = vlaneseq
        %v870 = vshrl.u32 %v869, 7
        %v871 = vsub.s32 %v856, %v870
        %v872 = vrot.slane %v842, %v871
        %v873 = vlaneseq
        %v874 = vshrl.u32 %v873, 7
        %v875 = vsub.s32 %v856, %v874
        %v876 = vrot.slane %v843, %v875
        %v877 = vlaneseq
        %v878 = vshrl.u32 %v877, 7
        %v879 = vsub.s32 %v856, %v878
        %v880 = vrot.slane %v844, %v879
        %v881 = vlaneseq
        %v882 = vshrl.u32 %v881, 7
        %v883 = vsub.s32 %v856, %v882
        %v884 = vrot.slane %v845, %v883
        %v885 = vlaneseq
        %v886 = vshrl.u32 %v885, 7
        %v887 = vsub.s32 %v856, %v886
        %v888 = vrot.slane %v846, %v887
        %vm889 = vcmask 1041409
        %v890 = vsel %vm889, %v864, %v860
        %vm891 = vcmask 1042434
        %v892 = vsel %vm891, %v868, %v890
        %vm893 = vcmask 1043459
        %v894 = vsel %vm893, %v872, %v892
        %vm895 = vcmask 1044484
        %v896 = vsel %vm895, %v876, %v894
        %vm897 = vcmask 1045509
        %v898 = vsel %vm897, %v880, %v896
        %vm899 = vcmask 1046534
        %v900 = vsel %vm899, %v884, %v898
        %vm901 = vcmask 1047559
        %v902 = vsel %vm901, %v888, %v900
        %vm904 = vcmask 64512
        %v905 = vsel %vm904, %v902, 0.0
        %v906 = vld [vmem:[%s374] sm:$0xff]
        %vm907 = vcmp.ne.s32.totalorder %v906, 0
        %v908 = vsel %vm907, -100000.0, %v905
        %v909 = vtanh.pop %v908
        %v910 = vmul.f32 %v909, 10.0
        %911 = vst [vmem:[%s424] sm:$0xff] %v910
        %s912 = sand.u32 %s221, 1
        %s913 = scalar_lea.sflag [#allocation5], %s912
        %s914 = sand.u32 %s221, 1
        %s915 = smul.addr %s914, 8
        %s916 = scalar_lea.vmem [#allocation12], %s915
        // Predicated region
        $region73: #{tpu_custom_call.1} parent=51 // pred_check
          %p917 = pneg %p231
        $region74: #{tpu_custom_call.1} parent=51 // pred_check_branch
          %919 = sbr.rel (%p917) target = $region76
        $region75: #{tpu_custom_call.1} parent=51 // pred_region
          %s921 = ssub.s32 128, 128
          %922 = vsyncadd %s913, %s921
          %s923 = smul.addr %s30, 128
          %s924 = scalar_lea.hbm %s8, %s923
          %s926 = sshll.u32 %s916, 4
          %s927 = int_to_ptr.vmem [resolvable:$true] %s926
          %929 = dma.vmem_to_hbm [thread:$0]  %s927, 128, %s924, %s913
        $region76: #{tpu_custom_call.1} parent=51 // pred_fallthru
          _
      $region52: #{tpu_custom_call.1} parent=5 // pred_fallthru
        _
      %p930 = scmp.le.s32.totalorder 2, %s25
      // Predicated region
      $region77: #{tpu_custom_call.1} parent=5 // pred_check
        %p931 = pneg %p930
      $region78: #{tpu_custom_call.1} parent=5 // pred_check_branch
        %933 = sbr.rel (%p931) target = $region80
      $region79: #{tpu_custom_call.1} parent=5 // pred_region
        %s934 = ssub.s32 %s25, 2
        // Predicated region
        $region81: #{tpu_custom_call.1} parent=79 // pred_check
          %p935 = pneg %p237
        $region82: #{tpu_custom_call.1} parent=79 // pred_check_branch
          %937 = sbr.rel (%p935) target = $region84
        $region83: #{tpu_custom_call.1} parent=79 // pred_region
          %s938 = sand.u32 %s222, 1
          %s939 = scalar_lea.sflag [#allocation5], %s938
          %s940 = sand.u32 %s222, 1
          %s941 = smul.addr %s940, 8
          %s942 = scalar_lea.vmem [#allocation12], %s941
          %943 = dma.done %s939, 128
        $region84: #{tpu_custom_call.1} parent=79 // pred_fallthru
          _
      $region80: #{tpu_custom_call.1} parent=5 // pred_fallthru
        _
    $region6: #{tpu_custom_call.1} parent=1 // loop_footer
      %s29 = sadd.s32 1, %s25
    $region7: #{tpu_custom_call.1} parent=1 // loop_footer_branch
      %24 = sbr.rel target = $region3
    $region8: #{tpu_custom_call.1} parent=1 // loop_exit
      _
    %944 = vsyncpa [#allocation4], 1
    %s945 = scalar_lea.sflag [#allocation4], 1
    %946 = vsyncpa %s945, 1
    %947 = vsyncpa [#allocation7], 1
    %s948 = scalar_lea.sflag [#allocation7], 1
    %949 = vsyncpa %s948, 1
    %950 = vsyncpa [#allocation10], 1
    %951 = vsyncpa [#allocation5], 1
    %s952 = scalar_lea.sflag [#allocation5], 1
    %953 = vsyncpa %s952, 1

</llo_original>
